<compile_context>
chip_gen: v7x
topology: tpu7x:2x2x1
jax: 0.10.0
libtpu: 0.0.40
codegen_flags: <defaults>
</compile_context>

<pallas_src>
import functools

import jax
import jax.numpy as jnp
from jax.experimental import pallas as pl
from jax.experimental.pallas import tpu as pltpu

NEGATIVE_RATIO = 3.0
EPS = 1e-6

_LANES = 128
_STATS_ROWS = 8


def _round_up(x, m):
    return (x + m - 1) // m * m


def _pick_vmem_limit():
    """Per-generation scoped-VMEM limit (128 MiB v5e/v6e, 64 MiB v7x)."""
    try:
        info = pltpu.get_tpu_info()
        cap = None
        for name in ("vmem_capacity_bytes", "vmem_size_bytes", "vmem_bytes"):
            v = getattr(info, name, None)
            if v:
                cap = int(v)
                break
        if cap:
            return int(min(100 * 2**20, max(cap // 2, cap - 16 * 2**20)))
    except Exception:
        pass
    return 32 * 2**20  # known-safe default


_VMEM_LIMIT = _pick_vmem_limit()


def _pick_tiles(n, hw, max_tile_lanes=None):
    """Lane-dense tiles for kernel 1 (t1) and kernel 2 (t2 = multiple of t1)."""
    hw128 = _round_up(hw, _LANES)
    budget = max(_VMEM_LIMIT // 2 - (2 << 20), 4 << 20)  # live bytes / grid step
    if max_tile_lanes is None:
        cap1, cap2 = 32768, 65536
    else:
        cap1 = cap2 = max(_LANES, (max_tile_lanes // _LANES) * _LANES)

    # kernel 1 streams ~17 B/lane/row (3 f32 in + f32 loss + i8 wneg)
    t1 = (budget // (17 * n)) // _LANES * _LANES
    t1 = max(_LANES, min(t1, cap1, hw128))
    # kernel 2 streams 5 B/lane/row (f32 loss + i8 wneg)
    t2 = (budget // (5 * n)) // _LANES * _LANES
    t2 = max(t1, min(t2, cap2, _round_up(hw128, t1)))
    t2 = (t2 // t1) * t1
    hw_pad = _round_up(hw, t2)
    return t1, t2, hw_pad


def _build_candidate_table(radix_bits):
    """Radix-select candidate thresholds, MSB-first over bits 30..0."""
    ncand = (1 << radix_bits) - 1
    groups = []
    rem = 31 % radix_bits
    first_w = rem if rem else radix_bits
    lo = 31 - first_w
    groups.append((lo, first_w))
    while lo > 0:
        lo -= radix_bits
        groups.append((lo, radix_bits))
    rows = []
    for lo, w in groups:
        cands = [(c << lo) for c in range(1, 1 << w)]
        while len(cands) < ncand:
            cands.append(cands[-1])           # pad (duplicates are harmless)
        rows.append(cands)
    rows.append([0] * ncand)                  # dummy row for the final pass
    flat = [v for row in rows for v in row]
    return jnp.array(flat, dtype=jnp.int32), len(groups), ncand


def bce_stats_kernel(pred_ref, gt_ref, mask_ref,
                     loss_ref, wneg_ref, counts_ref, psum_ref,
                     *, hw, binary):
    """One streaming pass: BCE loss, broadcast-quirk weights, exact partials."""
    t = pl.program_id(0)
    n, tl = loss_ref.shape
    col = jax.lax.broadcasted_iota(jnp.int32, (n, tl), 1) + t * tl
    valid = col < hw                                          # ragged-tile mask

    pred = jnp.where(valid, pred_ref[...].astype(jnp.float32), 0.5)
    gt = jnp.where(valid, gt_ref[...].astype(jnp.float32), 0.0)
    mask = jnp.where(valid, mask_ref[...].astype(jnp.float32), 0.0)

    if binary:
        # Binary gt/mask (DBNet): single-log BCE and factorized multiplicities.
        loss = -jnp.maximum(jnp.log(jnp.where(gt >= 0.5, pred, 1.0 - pred)),
                            -100.0)
        colsum = jnp.sum(gt, axis=0, keepdims=True)           # (1, T)
        pmul = mask * colsum                                  # sum_i byte(gt_i*mask_j)
        wneg = mask * (jnp.float32(n) - colsum)               # sum_i byte((1-gt_i)*mask_j)
    else:
        # General path: torch BCE (clamped logs) + per-i .byte()==floor loop.
        log_p = jnp.maximum(jnp.log(pred), -100.0)
        log_1mp = jnp.maximum(jnp.log(1.0 - pred), -100.0)
        loss = -(gt * log_p + (1.0 - gt) * log_1mp)
        one_minus_gt = 1.0 - gt
        pmul = jnp.zeros_like(mask)
        wneg = jnp.zeros_like(mask)
        for i in range(n):
            pmul = pmul + jnp.floor(gt[i:i + 1, :] * mask)
            wneg = wneg + jnp.floor(one_minus_gt[i:i + 1, :] * mask)

    loss = jnp.where(valid, loss, 0.0)
    loss_ref[...] = loss
    wneg_ref[...] = wneg.astype(jnp.int32).astype(jnp.int8)   # weights 0..N

    # Exact per-tile partials (int32 counts, f32 positive-loss sum).
    pos_cnt = jnp.sum(pmul.astype(jnp.int32))
    neg_cnt = jnp.sum(wneg.astype(jnp.int32))
    pos_loss_sum = jnp.sum(loss * pmul)

    row = jax.lax.broadcasted_iota(jnp.int32, (1, _STATS_ROWS, _LANES), 1)
    counts_ref[...] = jnp.where(row == 0, pos_cnt,
                                jnp.where(row == 1, neg_cnt, jnp.int32(0)))
    psum_ref[...] = jnp.where(row == 0, pos_loss_sum, jnp.float32(0.0))


def topk_select_kernel(k_ref, cand_ref, loss_ref, wneg_ref,
                       best_ref, cnt_ref, sum_ref, *, ncand):
    """Exact weighted top-k via multi-bit radix threshold search (no sort).

    grid = (n_search + 1, num_tiles), both sequential.  Search passes refine
    `radix_bits` bits of the int32 bit pattern of the k-th largest weighted
    negative loss (non-negative f32 patterns are order-isomorphic); the final
    pass counts / sums weighted entries strictly above it.
    """
    p = pl.program_id(0)
    t = pl.program_id(1)
    n_pass = pl.num_programs(0)
    n_tile = pl.num_programs(1)
    k = k_ref[0]
    is_final = p == n_pass - 1
    is_search = jnp.logical_not(is_final)

    @pl.when((p == 0) & (t == 0))
    def _init():
        best_ref[0] = jnp.int32(0)

    @pl.when(t == 0)
    def _reset_pass():
        for j in range(ncand):
            cnt_ref[j] = jnp.int32(0)
        sum_ref[0] = jnp.float32(0.0)

    best = best_ref[0]
    v = loss_ref[...]                               # (N, T) f32, >= 0
    wi = wneg_ref[...].astype(jnp.int32)            # (N, T) weights 0..N
    vbits = pltpu.bitcast(v, jnp.int32)

    @pl.when(is_search)
    def _count_candidates():
        for j in range(ncand):                      # static unroll (2^B - 1)
            cand = best | cand_ref[p * ncand + j]
            cnt_ref[j] = cnt_ref[j] + jnp.sum(jnp.where(vbits >= cand, wi, 0))

    @pl.when(is_final)
    def _count_sum_gt():
        sel = vbits > best
        cnt_ref[0] = cnt_ref[0] + jnp.sum(jnp.where(sel, wi, 0))
        sum_ref[0] = sum_ref[0] + jnp.sum(
            jnp.where(sel, wi.astype(jnp.float32) * v, 0.0))

    @pl.when((t == n_tile - 1) & is_search)
    def _accept():
        new_best = best
        for j in range(ncand):                      # candidates are increasing
            new_best = jnp.where(cnt_ref[j] >= k,
                                 best | cand_ref[p * ncand + j], new_best)
        best_ref[0] = new_best


def balance_cross_entropy_loss(pred, gt, mask,
                               negative_ratio=NEGATIVE_RATIO, eps=EPS,
                               return_origin=False, assume_binary=True,
                               radix_bits=2, max_tile_lanes=None):
    """pred, gt: (N, 1, H, W); mask: (N, H, W).  Returns a scalar f32 loss."""
    n, c, h, w = pred.shape
    assert c == 1
    assert n < 128, "int8 weight packing assumes batch < 128"
    radix_bits = max(1, min(int(radix_bits), 4))
    hw = h * w
    t1, t2, hw_pad = _pick_tiles(n, hw, max_tile_lanes)
    num_tiles1 = hw_pad // t1
    num_tiles2 = hw_pad // t2

    # Copy-free reshapes (no pad, no astype); masking / casts happen in-kernel.
    pred2 = pred.reshape(n, hw)
    gt2 = gt.reshape(n, hw)
    mask2 = mask.reshape(n, hw)

    in_spec = pl.BlockSpec((n, t1), lambda i: (0, i))
    stat_spec = pl.BlockSpec((1, _STATS_ROWS, _LANES), lambda i: (i, 0, 0))
    loss, wneg, counts, psums = pl.pallas_call(
        functools.partial(bce_stats_kernel, hw=hw, binary=bool(assume_binary)),
        grid=(num_tiles1,),
        in_specs=[in_spec, in_spec, in_spec],
        out_specs=(pl.BlockSpec((n, t1), lambda i: (0, i)),
                   pl.BlockSpec((n, t1), lambda i: (0, i)),
                   stat_spec, stat_spec),
        out_shape=(jax.ShapeDtypeStruct((n, hw_pad), jnp.float32),
                   jax.ShapeDtypeStruct((n, hw_pad), jnp.int8),
                   jax.ShapeDtypeStruct((num_tiles1, _STATS_ROWS, _LANES),
                                        jnp.int32),
                   jax.ShapeDtypeStruct((num_tiles1, _STATS_ROWS, _LANES),
                                        jnp.float32)),
        compiler_params=pltpu.CompilerParams(
            dimension_semantics=("parallel",),
            vmem_limit_bytes=_VMEM_LIMIT),
    )(pred2, gt2, mask2)

    pos_count = jnp.sum(counts[:, 0, 0])            # exact int32
    neg_total = jnp.sum(counts[:, 1, 0])             # exact int32
    pos_loss_sum = jnp.sum(psums[:, 0, 0])

    ratio = float(negative_ratio)
    if ratio == int(ratio):
        k_cap = pos_count * jnp.int32(int(ratio))    # exact integer path
    else:
        # TODO(synk): non-integer ratios use f32 floor; inexact past 2^24 positives.
        k_cap = jnp.floor(pos_count.astype(jnp.float32) * ratio).astype(jnp.int32)
    k = jnp.minimum(neg_total, k_cap)

    cand_tab, n_search, ncand = _build_candidate_table(radix_bits)

    grid_spec = pltpu.PrefetchScalarGridSpec(
        num_scalar_prefetch=2,
        grid=(n_search + 1, num_tiles2),
        in_specs=[pl.BlockSpec((n, t2), lambda p, t, kr, cr: (0, t)),
                  pl.BlockSpec((n, t2), lambda p, t, kr, cr: (0, t))],
        out_specs=(pl.BlockSpec(memory_space=pltpu.MemorySpace.SMEM),
                   pl.BlockSpec(memory_space=pltpu.MemorySpace.SMEM),
                   pl.BlockSpec(memory_space=pltpu.MemorySpace.SMEM)),
    )
    best_bits, cnt_gt, sum_gt = pl.pallas_call(
        functools.partial(topk_select_kernel, ncand=ncand),
        grid_spec=grid_spec,
        out_shape=(jax.ShapeDtypeStruct((1,), jnp.int32),      # k-th value bits
                   jax.ShapeDtypeStruct((ncand,), jnp.int32),  # counts (slot 0: > kth)
                   jax.ShapeDtypeStruct((1,), jnp.float32)),   # sum of entries > kth
        compiler_params=pltpu.CompilerParams(
            dimension_semantics=("arbitrary", "arbitrary"),
            vmem_limit_bytes=_VMEM_LIMIT),
    )(k.reshape(1), cand_tab, loss, wneg)

    kth = jax.lax.bitcast_convert_type(best_bits[0], jnp.float32)
    ties = jnp.maximum(k - cnt_gt[0], 0).astype(jnp.float32)
    topk_sum = jnp.where(k > 0, sum_gt[0] + ties * kth, jnp.float32(0.0))

    k_f = k.astype(jnp.float32)
    balance = (pos_loss_sum + topk_sum) / (pos_count.astype(jnp.float32) + k_f + eps)
    if return_origin:
        return balance, loss[:, :hw].reshape(n, h, w)
    return balance


def reference_loss(pred, gt, mask, negative_ratio=NEGATIVE_RATIO, eps=EPS):
    """Pure-JAX transcription of the PyTorch module (incl. the broadcast
    quirk).  Only for the small self-check; it materializes (N, N, H, W)."""
    positive = jnp.floor(gt * mask).astype(jnp.float32)          # (N, N, H, W)
    negative = jnp.floor((1.0 - gt) * mask).astype(jnp.float32)  # (N, N, H, W)
    positive_count = int(positive.sum())
    negative_count = min(int(negative.sum()), int(positive_count * negative_ratio))
    log_p = jnp.maximum(jnp.log(pred), -100.0)
    log_1mp = jnp.maximum(jnp.log(1.0 - pred), -100.0)
    loss = -(gt * log_p + (1.0 - gt) * log_1mp)[:, 0, :, :]      # (N, H, W)
    positive_loss = loss * positive
    negative_loss = loss * negative
    neg_sorted = jnp.sort(negative_loss.reshape(-1))[::-1]
    topk = neg_sorted[:negative_count].sum() if negative_count > 0 else jnp.float32(0.0)
    return (positive_loss.sum() + topk) / (positive_count + negative_count + eps)


if __name__ == "__main__":
    key = jax.random.PRNGKey(0)

    def make_inputs(k, n, h, w):
        k1, k2, k3 = jax.random.split(k, 3)
        pred = jax.nn.sigmoid(jax.random.normal(k1, (n, 1, h, w), dtype=jnp.float32))
        gt = (jax.random.uniform(k2, (n, 1, h, w)) < 0.3).astype(jnp.float32)
        mask = (jax.random.uniform(k3, (n, h, w)) < 0.8).astype(jnp.float32)
        return pred, gt, mask

    cases = [
        dict(n=2, h=16, w=16, kwargs={}),                        # single tile
        dict(n=2, h=15, w=20, kwargs={}),                        # ragged tile -> masking
        dict(n=3, h=64, w=32, kwargs={"max_tile_lanes": 256}),   # multi-tile grids
        dict(n=2, h=16, w=16, kwargs={"assume_binary": False}),  # general fallback path
    ]
    keys = jax.random.split(key, len(cases))
    for case, ck in zip(cases, keys):
        pred, gt, mask = make_inputs(ck, case["n"], case["h"], case["w"])
        out = jax.block_until_ready(
            balance_cross_entropy_loss(pred, gt, mask, **case["kwargs"]))
        ref = reference_loss(pred, gt, mask)
        assert jnp.allclose(out, ref, rtol=1e-4, atol=1e-5), \
            (case, float(out), float(ref))
    print("KERNEL_OK")
</pallas_src>

<mosaic_0001>
module attributes {stable_mosaic.version = 11 : i64} {
  func.func @bce_stats_kernel(%arg0: i32, %arg1: memref<2x256xf32, #tpu.memory_space<vmem>>, %arg2: memref<2x256xf32, #tpu.memory_space<vmem>>, %arg3: memref<2x256xf32, #tpu.memory_space<vmem>>, %arg4: memref<2x256xf32, #tpu.memory_space<vmem>>, %arg5: memref<2x256xi8, #tpu.memory_space<vmem>>, %arg6: memref<1x8x128xi32, #tpu.memory_space<vmem>>, %arg7: memref<1x8x128xf32, #tpu.memory_space<vmem>>) attributes {dimension_semantics = [#tpu.dimension_semantics<parallel>], iteration_bounds = array<i64: 1>, scalar_prefetch = 0 : i64, scratch_operands = 0 : i64, tpu.core_type = #tpu.core_type<tc>, window_params = [{transform_indices = @transform_0, window_bounds = array<i64: 2, 256>}, {transform_indices = @transform_1, window_bounds = array<i64: 2, 256>}, {transform_indices = @transform_2, window_bounds = array<i64: 2, 256>}, {transform_indices = @transform_3, window_bounds = array<i64: 2, 256>}, {transform_indices = @transform_4, window_bounds = array<i64: 2, 256>}, {transform_indices = @transform_5, window_bounds = array<i64: 1, 8, 128>}, {transform_indices = @transform_6, window_bounds = array<i64: 1, 8, 128>}]} {
    %0 = tpu.iota {dimensions = array<i32: 1>} : vector<2x256xi32>
    %c256_i32 = arith.constant 256 : i32
    %1 = arith.muli %arg0, %c256_i32 : i32
    %2 = vector.broadcast %1 : i32 to vector<2x256xi32>
    %3 = arith.addi %0, %2 : vector<2x256xi32>
    %c256_i32_0 = arith.constant 256 : i32
    %4 = vector.broadcast %c256_i32_0 : i32 to vector<2x256xi32>
    %5 = arith.cmpi slt, %3, %4 : vector<2x256xi32>
    %c0 = arith.constant 0 : index
    %c0_1 = arith.constant 0 : index
    %6 = vector.load %arg1[%c0, %c0_1] : memref<2x256xf32, #tpu.memory_space<vmem>>, vector<2x256xf32>
    %cst = arith.constant 5.000000e-01 : f32
    %7 = vector.broadcast %cst : f32 to vector<2x256xf32>
    %8 = arith.select %5, %6, %7 : vector<2x256xi1>, vector<2x256xf32>
    %c0_2 = arith.constant 0 : index
    %c0_3 = arith.constant 0 : index
    %9 = vector.load %arg2[%c0_2, %c0_3] : memref<2x256xf32, #tpu.memory_space<vmem>>, vector<2x256xf32>
    %cst_4 = arith.constant 0.000000e+00 : f32
    %10 = vector.broadcast %cst_4 : f32 to vector<2x256xf32>
    %11 = arith.select %5, %9, %10 : vector<2x256xi1>, vector<2x256xf32>
    %c0_5 = arith.constant 0 : index
    %c0_6 = arith.constant 0 : index
    %12 = vector.load %arg3[%c0_5, %c0_6] : memref<2x256xf32, #tpu.memory_space<vmem>>, vector<2x256xf32>
    %cst_7 = arith.constant 0.000000e+00 : f32
    %13 = vector.broadcast %cst_7 : f32 to vector<2x256xf32>
    %14 = arith.select %5, %12, %13 : vector<2x256xi1>, vector<2x256xf32>
    %cst_8 = arith.constant 5.000000e-01 : f32
    %15 = vector.broadcast %cst_8 : f32 to vector<2x256xf32>
    %16 = arith.cmpf oge, %11, %15 : vector<2x256xf32>
    %cst_9 = arith.constant 1.000000e+00 : f32
    %17 = vector.broadcast %cst_9 : f32 to vector<2x256xf32>
    %18 = arith.subf %17, %8 : vector<2x256xf32>
    %19 = arith.select %16, %8, %18 : vector<2x256xi1>, vector<2x256xf32>
    %20 = math.log %19 : vector<2x256xf32>
    %cst_10 = arith.constant -1.000000e+02 : f32
    %21 = vector.broadcast %cst_10 : f32 to vector<2x256xf32>
    %22 = arith.maximumf %20, %21 : vector<2x256xf32>
    %cst_11 = arith.constant 0.000000e+00 : f32
    %23 = vector.broadcast %cst_11 : f32 to vector<2x256xf32>
    %24 = arith.subf %23, %22 : vector<2x256xf32>
    %cst_12 = arith.constant dense<0.000000e+00> : vector<256xf32>
    %25 = vector.multi_reduction <add>, %11, %cst_12 [0] : vector<2x256xf32> to vector<256xf32>
    %26 = vector.shape_cast %25 : vector<256xf32> to vector<1x256xf32>
    %27 = vector.broadcast %26 : vector<1x256xf32> to vector<2x256xf32>
    %28 = arith.mulf %14, %27 : vector<2x256xf32>
    %cst_13 = arith.constant 2.000000e+00 : f32
    %29 = vector.broadcast %cst_13 : f32 to vector<1x256xf32>
    %30 = arith.subf %29, %26 : vector<1x256xf32>
    %31 = vector.broadcast %30 : vector<1x256xf32> to vector<2x256xf32>
    %32 = arith.mulf %14, %31 : vector<2x256xf32>
    %cst_14 = arith.constant 0.000000e+00 : f32
    %33 = vector.broadcast %cst_14 : f32 to vector<2x256xf32>
    %34 = arith.select %5, %24, %33 : vector<2x256xi1>, vector<2x256xf32>
    %c0_15 = arith.constant 0 : index
    %c0_16 = arith.constant 0 : index
    %35 = vector.load %arg4[%c0_15, %c0_16] : memref<2x256xf32, #tpu.memory_space<vmem>>, vector<2x256xf32>
    tpu.vector_store %arg4[%c0_15, %c0_16], %34 {strides = array<i32>} : memref<2x256xf32, #tpu.memory_space<vmem>>, vector<2x256xf32>,
    %36 = arith.fptosi %32 : vector<2x256xf32> to vector<2x256xi32>
    %37 = arith.trunci %36 : vector<2x256xi32> to vector<2x256xi8>
    %c0_17 = arith.constant 0 : index
    %c0_18 = arith.constant 0 : index
    %38 = vector.load %arg5[%c0_17, %c0_18] : memref<2x256xi8, #tpu.memory_space<vmem>>, vector<2x256xi8>
    tpu.vector_store %arg5[%c0_17, %c0_18], %37 {strides = array<i32>} : memref<2x256xi8, #tpu.memory_space<vmem>>, vector<2x256xi8>,
    %39 = arith.fptosi %28 : vector<2x256xf32> to vector<2x256xi32>
    %40 = vector.shape_cast %39 : vector<2x256xi32> to vector<1x2x256xi32>
    %cst_19 = arith.constant dense<0> : vector<1xi32>
    %41 = vector.multi_reduction <add>, %40, %cst_19 [1, 2] : vector<1x2x256xi32> to vector<1xi32>
    %42 = vector.shape_cast %41 : vector<1xi32> to vector<1x1x1xi32>
    %43 = vector.extract %42[0, 0, 0] : i32 from vector<1x1x1xi32>
    %44 = arith.fptosi %32 : vector<2x256xf32> to vector<2x256xi32>
    %45 = vector.shape_cast %44 : vector<2x256xi32> to vector<1x2x256xi32>
    %cst_20 = arith.constant dense<0> : vector<1xi32>
    %46 = vector.multi_reduction <add>, %45, %cst_20 [1, 2] : vector<1x2x256xi32> to vector<1xi32>
    %47 = vector.shape_cast %46 : vector<1xi32> to vector<1x1x1xi32>
    %48 = vector.extract %47[0, 0, 0] : i32 from vector<1x1x1xi32>
    %49 = arith.mulf %34, %28 : vector<2x256xf32>
    %50 = vector.shape_cast %49 : vector<2x256xf32> to vector<1x2x256xf32>
    %cst_21 = arith.constant dense<0.000000e+00> : vector<1xf32>
    %51 = vector.multi_reduction <add>, %50, %cst_21 [1, 2] : vector<1x2x256xf32> to vector<1xf32>
    %52 = vector.shape_cast %51 : vector<1xf32> to vector<1x1x1xf32>
    %53 = vector.extract %52[0, 0, 0] : f32 from vector<1x1x1xf32>
    %54 = tpu.iota {dimensions = array<i32: 1>} : vector<1x8x128xi32>
    %c0_i32 = arith.constant 0 : i32
    %55 = vector.broadcast %c0_i32 : i32 to vector<1x8x128xi32>
    %56 = arith.cmpi eq, %54, %55 : vector<1x8x128xi32>
    %c1_i32 = arith.constant 1 : i32
    %57 = vector.broadcast %c1_i32 : i32 to vector<1x8x128xi32>
    %58 = arith.cmpi eq, %54, %57 : vector<1x8x128xi32>
    %c0_i32_22 = arith.constant 0 : i32
    %59 = vector.broadcast %48 : i32 to vector<1x8x128xi32>
    %60 = vector.broadcast %c0_i32_22 : i32 to vector<1x8x128xi32>
    %61 = arith.select %58, %59, %60 : vector<1x8x128xi1>, vector<1x8x128xi32>
    %62 = vector.broadcast %43 : i32 to vector<1x8x128xi32>
    %63 = arith.select %56, %62, %61 : vector<1x8x128xi1>, vector<1x8x128xi32>
    %c0_23 = arith.constant 0 : index
    %c0_24 = arith.constant 0 : index
    %c0_25 = arith.constant 0 : index
    %64 = vector.load %arg6[%c0_23, %c0_24, %c0_25] : memref<1x8x128xi32, #tpu.memory_space<vmem>>, vector<1x8x128xi32>
    tpu.vector_store %arg6[%c0_23, %c0_24, %c0_25], %63 {strides = array<i32>} : memref<1x8x128xi32, #tpu.memory_space<vmem>>, vector<1x8x128xi32>,
    %c0_i32_26 = arith.constant 0 : i32
    %65 = vector.broadcast %c0_i32_26 : i32 to vector<1x8x128xi32>
    %66 = arith.cmpi eq, %54, %65 : vector<1x8x128xi32>
    %cst_27 = arith.constant 0.000000e+00 : f32
    %67 = vector.broadcast %53 : f32 to vector<1x8x128xf32>
    %68 = vector.broadcast %cst_27 : f32 to vector<1x8x128xf32>
    %69 = arith.select %66, %67, %68 : vector<1x8x128xi1>, vector<1x8x128xf32>
    %c0_28 = arith.constant 0 : index
    %c0_29 = arith.constant 0 : index
    %c0_30 = arith.constant 0 : index
    %70 = vector.load %arg7[%c0_28, %c0_29, %c0_30] : memref<1x8x128xf32, #tpu.memory_space<vmem>>, vector<1x8x128xf32>
    tpu.vector_store %arg7[%c0_28, %c0_29, %c0_30], %69 {strides = array<i32>} : memref<1x8x128xf32, #tpu.memory_space<vmem>>, vector<1x8x128xf32>,
    return
  }
  func.func @transform_0(%arg0: i32) -> (i32, i32) {
    %c0_i32 = arith.constant 0 : i32
    %c0_i32_0 = arith.constant 0 : i32
    return %c0_i32, %arg0 : i32, i32
  }
  func.func @transform_1(%arg0: i32) -> (i32, i32) {
    %c0_i32 = arith.constant 0 : i32
    %c0_i32_0 = arith.constant 0 : i32
    return %c0_i32, %arg0 : i32, i32
  }
  func.func @transform_2(%arg0: i32) -> (i32, i32) {
    %c0_i32 = arith.constant 0 : i32
    %c0_i32_0 = arith.constant 0 : i32
    return %c0_i32, %arg0 : i32, i32
  }
  func.func @transform_3(%arg0: i32) -> (i32, i32) {
    %c0_i32 = arith.constant 0 : i32
    %c0_i32_0 = arith.constant 0 : i32
    return %c0_i32, %arg0 : i32, i32
  }
  func.func @transform_4(%arg0: i32) -> (i32, i32) {
    %c0_i32 = arith.constant 0 : i32
    %c0_i32_0 = arith.constant 0 : i32
    return %c0_i32, %arg0 : i32, i32
  }
  func.func @transform_5(%arg0: i32) -> (i32, i32, i32) {
    %c0_i32 = arith.constant 0 : i32
    %c0_i32_0 = arith.constant 0 : i32
    %c0_i32_1 = arith.constant 0 : i32
    return %arg0, %c0_i32, %c0_i32_0 : i32, i32, i32
  }
  func.func @transform_6(%arg0: i32) -> (i32, i32, i32) {
    %c0_i32 = arith.constant 0 : i32
    %c0_i32_0 = arith.constant 0 : i32
    %c0_i32_1 = arith.constant 0 : i32
    return %arg0, %c0_i32, %c0_i32_0 : i32, i32, i32
  }
}

</mosaic_0001>

<llo_original>
// kernel: tpu_custom_call.1
$region0: #{tpu_custom_call.1}
  #allocation0 [shape = 'u32[]', space=smem, size = 0x4, offset = 0x4, fixed_abs, tag = 'smem constant byte address 0x4 - core index']
  #allocation1 [shape = 'u32[144,128]{1,0:T(1,128)}', space=vmem, size = 0x12000, scoped, tag = 'internal scratch']
  %s0 = inlined_call_operand.hbm [shape: f32[2,256], index: 0, kind: input, shape index: {}]
  %s1 = inlined_call_operand.hbm [shape: f32[2,256], index: 1, kind: input, shape index: {}]
  %s2 = inlined_call_operand.vmem [shape: f32[2,256], index: 2, kind: input, shape index: {}]
  %s3 = inlined_call_operand.hbm [shape: f32[2,256], index: 3, kind: output, shape index: {0}]
  %s4 = inlined_call_operand.hbm [shape: s8[2,256], index: 4, kind: output, shape index: {1}]
  %s5 = inlined_call_operand.hbm [shape: s32[1,8,128], index: 5, kind: output, shape index: {2}]
  %s6 = inlined_call_operand.hbm [shape: f32[1,8,128], index: 6, kind: output, shape index: {3}]
  %7 = xla_tuple %s3, %s4, %s5, %s6
  %s8 = sld [smem:[#allocation0]]
  $region54: #{tpu_custom_call.1} parent=0
    _
  %s10 = ssub.s32 1, %s8
  %s11 = scalar_select 0, %s10, %s8
  $region1: #{tpu_custom_call.1} parent=0
    #allocation2 [shape = 'u8[2048]{0}', space=vmem, size = 0x800, scoped, tag = 'input window, operand 0, single buffered']
    #allocation3 [shape = 's32[1]{0}', space=sflag, size = 0x4, scoped, tag = 'scoped memory for tpu_custom_call.1']
    #allocation4 [shape = 's32[1]{0}', space=sflag, size = 0x4, scoped, tag = 'scoped memory for tpu_custom_call.1']
    #allocation5 [shape = 'u8[2048]{0}', space=vmem, size = 0x800, scoped, tag = 'input window, operand 1, single buffered']
    #allocation6 [shape = 's32[1]{0}', space=sflag, size = 0x4, scoped, tag = 'scoped memory for tpu_custom_call.1']
    #allocation7 [shape = 'u8[2048]{0}', space=vmem, size = 0x800, scoped, tag = 'output window, operand 0, single buffered']
    #allocation8 [shape = 'u8[1024]{0}', space=vmem, size = 0x400, scoped, tag = 'output window, operand 1, single buffered']
    #allocation9 [shape = 's32[1]{0}', space=sflag, size = 0x4, scoped, tag = 'scoped memory for tpu_custom_call.1']
    #allocation10 [shape = 'u8[4096]{0}', space=vmem, size = 0x1000, scoped, tag = 'output window, operand 2, single buffered']
    #allocation11 [shape = 'u8[4096]{0}', space=vmem, size = 0x1000, scoped, tag = 'output window, operand 3, single buffered']
    #allocation12 [shape = 's32[1]{0}', space=sflag, size = 0x4, scoped, tag = 'scoped memory for tpu_custom_call.1']
    %12 = vsyncpa [#allocation3], 0
    %13 = vsyncpa [#allocation6], 0
    %14 = vsyncpa [#allocation4], 0
    %15 = vsyncpa [#allocation9], 0
    %16 = vsyncpa [#allocation12], 0
    // Predicated region
    $region2: #{tpu_custom_call.1} parent=1 // pred_check
      _
    $region3: #{tpu_custom_call.1} parent=1 // pred_check_branch
      %18 = sbr.rel (0) target = $region5
    $region4: #{tpu_custom_call.1} parent=1 // pred_region
      %s20 = ssub.s32 64, 64
      %21 = vsyncadd [#allocation3], %s20
      %s23 = sshll.u32 [#allocation2], 4
      %s24 = int_to_ptr.vmem [resolvable:$true] %s23
      %26 = dma.hbm_to_vmem [thread:$0]  %s0, 64, %s24, [#allocation3]
    $region5: #{tpu_custom_call.1} parent=1 // pred_fallthru
      _
    // Predicated region
    $region6: #{tpu_custom_call.1} parent=1 // pred_check
      _
    $region7: #{tpu_custom_call.1} parent=1 // pred_check_branch
      %28 = sbr.rel (0) target = $region9
    $region8: #{tpu_custom_call.1} parent=1 // pred_region
      %s30 = ssub.s32 64, 64
      %31 = vsyncadd [#allocation6], %s30
      %s33 = sshll.u32 [#allocation5], 4
      %s34 = int_to_ptr.vmem [resolvable:$true] %s33
      %36 = dma.hbm_to_vmem [thread:$0]  %s1, 64, %s34, [#allocation6]
    $region9: #{tpu_custom_call.1} parent=1 // pred_fallthru
      _
    // Predicated region
    $region10: #{tpu_custom_call.1} parent=1 // pred_check
      _
    $region11: #{tpu_custom_call.1} parent=1 // pred_check_branch
      %38 = sbr.rel (0) target = $region13
    $region12: #{tpu_custom_call.1} parent=1 // pred_region
      _
    $region13: #{tpu_custom_call.1} parent=1 // pred_fallthru
      _
    // Predicated region
    $region14: #{tpu_custom_call.1} parent=1 // pred_check
      _
    $region15: #{tpu_custom_call.1} parent=1 // pred_check_branch
      %40 = sbr.rel (0) target = $region17
    $region16: #{tpu_custom_call.1} parent=1 // pred_region
      %41 = dma.done [#allocation3], 64
    $region17: #{tpu_custom_call.1} parent=1 // pred_fallthru
      _
    // Predicated region
    $region18: #{tpu_custom_call.1} parent=1 // pred_check
      _
    $region19: #{tpu_custom_call.1} parent=1 // pred_check_branch
      %43 = sbr.rel (0) target = $region21
    $region20: #{tpu_custom_call.1} parent=1 // pred_region
      %44 = dma.done [#allocation6], 64
    $region21: #{tpu_custom_call.1} parent=1 // pred_fallthru
      _
    %v45 = vlaneseq
    %v46 = vand.u32 %v45, 127
    %v47 = vadd.s32 %v46, 128
    %s48 = smul.u32 0, 256
    %v49 = vstv %s48
    %v50 = vadd.s32 %v46, %v49
    %v51 = vadd.s32 %v47, %v49
    %vm52 = vcmp.lt.s32.totalorder %v50, 256
    %vm53 = vcmp.lt.s32.totalorder %v51, 256
    %v54 = vld [vmem:[#allocation2] sm:$0xf]
    %v57 = vunpack.c.l.s4 1983009808
    %v58 = vunpack.c.0.s8 %v57
    %v59 = vlaneseq
    %v60 = vshrl.u32 %v59, 7
    %v61 = vsub.s32 %v58, %v60
    %v62 = vrot.slane %v54, %v61
    %v63 = vcombine.high %v62, %v62
    %v66 = vsel %vm52, %v62, 0.5
    %v67 = vsel %vm53, %v63, 0.5
    %v68 = vld [vmem:[#allocation5] sm:$0xf]
    %v71 = vunpack.c.l.s4 1983009808
    %v72 = vunpack.c.0.s8 %v71
    %v73 = vlaneseq
    %v74 = vshrl.u32 %v73, 7
    %v75 = vsub.s32 %v72, %v74
    %v76 = vrot.slane %v68, %v75
    %v77 = vcombine.high %v76, %v76
    %v80 = vsel %vm52, %v76, 0.0
    %v81 = vsel %vm53, %v77, 0.0
    %v82 = vld [vmem:[%s2] sm:$0xf]
    %v85 = vunpack.c.l.s4 1983009808
    %v86 = vunpack.c.0.s8 %v85
    %v87 = vlaneseq
    %v88 = vshrl.u32 %v87, 7
    %v89 = vsub.s32 %v86, %v88
    %v90 = vrot.slane %v82, %v89
    %v91 = vcombine.high %v90, %v90
    %v94 = vsel %vm52, %v90, 0.0
    %v95 = vsel %vm53, %v91, 0.0
    %vm96 = vcmp.ge.f32.partialorder %v80, 0.5
    %vm97 = vcmp.ge.f32.partialorder %v81, 0.5
    %v98 = vsub.f32 1.0, %v66
    %v99 = vsub.f32 1.0, %v67
    %v100 = vsel %vm96, %v66, %v98
    %v101 = vsel %vm97, %v67, %v99
    %v102 = vlog2.pop %v100
    %v103 = vmul.f32 %v102, 0.6931472
    %v104 = vlog2.pop %v101
    %v105 = vmul.f32 %v104, 0.6931472
    %v106 = vmax.f32 %v103, -100.0
    %v107 = vmax.f32 %v105, -100.0
    %v108 = vsub.f32 0.0, %v106
    %v109 = vsub.f32 0.0, %v107
    %vm110 = vcmask 1041408
    %v111 = vsel %vm110, %v80, 0.0
    %v112 = vrot.slane %v111, 4
    %v113 = vadd.f32 %v111, %v112
    %v114 = vrot.slane %v113, 2
    %v115 = vadd.f32 %v113, %v114
    %v116 = vrot.slane %v115, 1
    %v117 = vadd.f32 %v115, %v116
    %v118 = vsel %vm110, %v81, 0.0
    %v119 = vrot.slane %v118, 4
    %v120 = vadd.f32 %v118, %v119
    %v121 = vrot.slane %v120, 2
    %v122 = vadd.f32 %v120, %v121
    %v123 = vrot.slane %v122, 1
    %v124 = vadd.f32 %v122, %v123
    %v125 = vmul.f32 %v94, %v117
    %v126 = vmul.f32 %v95, %v124
    %v127 = vsub.f32 2.0, %v117
    %v128 = vsub.f32 2.0, %v124
    %v129 = vmul.f32 %v94, %v127
    %v130 = vmul.f32 %v95, %v128
    %v131 = vsel %vm52, %v108, 0.0
    %v132 = vsel %vm53, %v109, 0.0
    %v135 = vcombine.low %v131, %v132
    %v137 = vunpack.c.l.s4 1983009808
    %v138 = vunpack.c.0.s8 %v137
    %v139 = vlaneseq
    %v140 = vshrl.u32 %v139, 7
    %v141 = vsub.s32 %v138, %v140
    %v142 = vrot.slane %v135, %v141
    %144 = vst [vmem:[#allocation7] sm:$0xf] %v142
    %v145 = vcvt.f32.s32.to.zero.pseudo %v129
    %v146 = vcvt.f32.s32.to.zero.pseudo %v130
    %v147 = vpack.c.b16 %v145, %v145
    %v148 = vpack.c.b8 %v147, %v147
    %v149 = vpack.c.b16 %v146, %v146
    %v150 = vpack.c.b8 %v149, %v149
    %v151 = vcombine.low %v148, %v150
    %v153 = vunpack.c.l.s4 1966171168
    %v154 = vunpack.c.0.s8 %v153
    %v155 = vlaneseq
    %v156 = vshrl.u32 %v155, 7
    %v157 = vsub.s32 %v154, %v156
    %v158 = vrot.slane %v151, %v157
    %v160 = vunpack.c.l.s4 1966171168
    %v161 = vunpack.c.0.s8 %v160
    %v162 = vlaneseq
    %v163 = vshrl.u32 %v162, 7
    %v164 = vsub.s32 %v161, %v163
    %v165 = vrot.slane %v158, %v164
    %vm166 = vcmask 1040384
    %vm167 = vsmask.f32 256
    %vm168 = vmand %vm166, %vm167
    %vm169 = vcmask 1041409
    %vm170 = vsmask.f32 1280
    %vm171 = vmand %vm169, %vm170
    %vm172 = vmor %vm171, %vm168
    %v173 = vld [vmem:[#allocation8] sm:$0x3]
    %v174 = vsel %vm172, %v165, %v173
    %175 = vst [vmem:[#allocation8] sm:$0x3] %v174
    %v176 = vcvt.f32.s32.to.zero.pseudo %v125
    %v177 = vcvt.f32.s32.to.zero.pseudo %v126
    %v178 = vsel %vm110, %v176, 0
    %v179 = vsel %vm110, %v177, 0
    %v180 = vadd.s32 %v178, %v179
    %v181 = vand.u32 %v180, 65535
    %v182 = vshrl.u32 %v180, 16
    %v183 = vcvt.s32.f32 %v181
    %v184 = vcvt.s32.f32 %v182
    %185 = vadd.xlane.f32.xlu0 %v183
    %v186 = vpop.xlane.xlu0 %185
    %187 = vadd.xlane.f32.xlu0 %v184
    %v188 = vpop.xlane.xlu0 %187
    %v189 = vcvt.f32.s32 %v186
    %v190 = vcvt.f32.s32 %v188
    %v191 = vshll.u32 %v190, 16
    %v192 = vadd.s32 %v191, %v189
    %v193 = vrot.slane %v192, 4
    %v194 = vadd.s32 %v192, %v193
    %v195 = vrot.slane %v194, 2
    %v196 = vadd.s32 %v194, %v195
    %v197 = vrot.slane %v196, 1
    %v198 = vadd.s32 %v196, %v197
    %s199 = vtos %v198
    %v200 = vsel %vm110, %v145, 0
    %v201 = vsel %vm110, %v146, 0
    %v202 = vadd.s32 %v200, %v201
    %v203 = vand.u32 %v202, 65535
    %v204 = vshrl.u32 %v202, 16
    %v205 = vcvt.s32.f32 %v203
    %v206 = vcvt.s32.f32 %v204
    %207 = vadd.xlane.f32.xlu0 %v205
    %v208 = vpop.xlane.xlu0 %207
    %209 = vadd.xlane.f32.xlu0 %v206
    %v210 = vpop.xlane.xlu0 %209
    %v211 = vcvt.f32.s32 %v208
    %v212 = vcvt.f32.s32 %v210
    %v213 = vshll.u32 %v212, 16
    %v214 = vadd.s32 %v213, %v211
    %v215 = vrot.slane %v214, 4
    %v216 = vadd.s32 %v214, %v215
    %v217 = vrot.slane %v216, 2
    %v218 = vadd.s32 %v216, %v217
    %v219 = vrot.slane %v218, 1
    %v220 = vadd.s32 %v218, %v219
    %s221 = vtos %v220
    %v222 = vmul.f32 %v131, %v125
    %v223 = vmul.f32 %v132, %v126
    %v224 = vsel %vm110, %v222, 0.0
    %v225 = vsel %vm110, %v223, 0.0
    %v226 = vadd.f32 %v224, %v225
    %227 = vadd.xlane.f32.xlu0 %v226
    %v228 = vpop.xlane.xlu0 %227
    %v229 = vrot.slane %v228, 4
    %v230 = vadd.f32 %v228, %v229
    %v231 = vrot.slane %v230, 2
    %v232 = vadd.f32 %v230, %v231
    %v233 = vrot.slane %v232, 1
    %v234 = vadd.f32 %v232, %v233
    %s235 = vtos %v234
    %v236 = vlaneseq
    %v237 = vshrl.u32 %v236, 7
    %vm238 = vcmp.eq.s32.totalorder %v237, 0
    %vm239 = vcmp.eq.s32.totalorder %v237, 1
    %v240 = vstv %s221
    %v241 = vsel %vm239, %v240, 0
    %v242 = vstv %s199
    %v243 = vsel %vm238, %v242, %v241
    %244 = vst [vmem:[#allocation10] sm:$0xff] %v243
    %v245 = vstv %s235
    %v246 = vsel %vm238, %v245, 0.0
    %247 = vst [vmem:[#allocation11] sm:$0xff] %v246
    // Predicated region
    $region22: #{tpu_custom_call.1} parent=1 // pred_check
      _
    $region23: #{tpu_custom_call.1} parent=1 // pred_check_branch
      %249 = sbr.rel (0) target = $region25
    $region24: #{tpu_custom_call.1} parent=1 // pred_region
      %s251 = ssub.s32 64, 64
      %252 = vsyncadd [#allocation4], %s251
      %s254 = sshll.u32 [#allocation7], 4
      %s255 = int_to_ptr.vmem [resolvable:$true] %s254
      %257 = dma.vmem_to_hbm [thread:$0]  %s255, 64, %s3, [#allocation4]
    $region25: #{tpu_custom_call.1} parent=1 // pred_fallthru
      _
    // Predicated region
    $region26: #{tpu_custom_call.1} parent=1 // pred_check
      _
    $region27: #{tpu_custom_call.1} parent=1 // pred_check_branch
      %259 = sbr.rel (0) target = $region29
    $region28: #{tpu_custom_call.1} parent=1 // pred_region
      %s261 = ssub.s32 32, 32
      %262 = vsyncadd [#allocation9], %s261
      %s264 = sshll.u32 [#allocation8], 4
      %s265 = int_to_ptr.vmem [resolvable:$true] %s264
      %267 = dma.vmem_to_hbm [thread:$0]  %s265, 32, %s4, [#allocation9]
    $region29: #{tpu_custom_call.1} parent=1 // pred_fallthru
      _
    // Predicated region
    $region30: #{tpu_custom_call.1} parent=1 // pred_check
      _
    $region31: #{tpu_custom_call.1} parent=1 // pred_check_branch
      %269 = sbr.rel (0) target = $region33
    $region32: #{tpu_custom_call.1} parent=1 // pred_region
      %s271 = ssub.s32 128, 128
      %272 = vsyncadd [#allocation9], %s271
      %s274 = sshll.u32 [#allocation10], 4
      %s275 = int_to_ptr.vmem [resolvable:$true] %s274
      %277 = dma.vmem_to_hbm [thread:$0]  %s275, 128, %s5, [#allocation9]
    $region33: #{tpu_custom_call.1} parent=1 // pred_fallthru
      _
    // Predicated region
    $region34: #{tpu_custom_call.1} parent=1 // pred_check
      _
    $region35: #{tpu_custom_call.1} parent=1 // pred_check_branch
      %279 = sbr.rel (0) target = $region37
    $region36: #{tpu_custom_call.1} parent=1 // pred_region
      %s281 = ssub.s32 128, 128
      %282 = vsyncadd [#allocation12], %s281
      %s284 = sshll.u32 [#allocation11], 4
      %s285 = int_to_ptr.vmem [resolvable:$true] %s284
      %287 = dma.vmem_to_hbm [thread:$0]  %s285, 128, %s6, [#allocation12]
    $region37: #{tpu_custom_call.1} parent=1 // pred_fallthru
      _
    // Predicated region
    $region38: #{tpu_custom_call.1} parent=1 // pred_check
      _
    $region39: #{tpu_custom_call.1} parent=1 // pred_check_branch
      %289 = sbr.rel (0) target = $region41
    $region40: #{tpu_custom_call.1} parent=1 // pred_region
      %290 = dma.done [#allocation4], 64
    $region41: #{tpu_custom_call.1} parent=1 // pred_fallthru
      _
    // Predicated region
    $region42: #{tpu_custom_call.1} parent=1 // pred_check
      _
    $region43: #{tpu_custom_call.1} parent=1 // pred_check_branch
      %292 = sbr.rel (0) target = $region45
    $region44: #{tpu_custom_call.1} parent=1 // pred_region
      %293 = dma.done [#allocation9], 32
    $region45: #{tpu_custom_call.1} parent=1 // pred_fallthru
      _
    // Predicated region
    $region46: #{tpu_custom_call.1} parent=1 // pred_check
      _
    $region47: #{tpu_custom_call.1} parent=1 // pred_check_branch
      %295 = sbr.rel (0) target = $region49
    $region48: #{tpu_custom_call.1} parent=1 // pred_region
      %296 = dma.done [#allocation9], 128
    $region49: #{tpu_custom_call.1} parent=1 // pred_fallthru
      _
    // Predicated region
    $region50: #{tpu_custom_call.1} parent=1 // pred_check
      _
    $region51: #{tpu_custom_call.1} parent=1 // pred_check_branch
      %298 = sbr.rel (0) target = $region53
    $region52: #{tpu_custom_call.1} parent=1 // pred_region
      %299 = dma.done [#allocation12], 128
    $region53: #{tpu_custom_call.1} parent=1 // pred_fallthru
      _
    %300 = vsyncpa [#allocation3], 1
    %301 = vsyncpa [#allocation6], 1
    %302 = vsyncpa [#allocation4], 1
    %303 = vsyncpa [#allocation9], 1
    %304 = vsyncpa [#allocation12], 1

</llo_original>
